<compile_context>
chip_gen: v5e
topology: v5e:2x2
jax: 0.10.0
libtpu: 0.0.40
codegen_flags: <defaults>
</compile_context>

<pallas_src>
import jax
import jax.numpy as jnp
from jax.experimental import pallas as pl
from jax.experimental.pallas import tpu as pltpu


def decoder_kernel(z_ref, w1_ref, b1_ref, w2_ref, b2_ref, w3_ref, b3_ref,
                   out_ref):
    # Biases read once per grid step; (1, N) rows broadcast against (TM, N).
    b1 = b1_ref[...]
    b2 = b2_ref[...]
    b3 = b3_ref[...]

    # ---- FC_hidden + LeakyReLU(0.2) ----
    h = jnp.dot(z_ref[...], w1_ref[...],
                preferred_element_type=jnp.float32) + b1
    h = jnp.where(h > 0, h, 0.2 * h)

    # ---- FC_hidden2 + LeakyReLU(0.2) ----
    h = jnp.dot(h, w2_ref[...],
                preferred_element_type=jnp.float32) + b2
    h = jnp.where(h > 0, h, 0.2 * h)

    # ---- FC_output (lane-padded to 896 cols) + sigmoid ----
    o = jnp.dot(h, w3_ref[...],
                preferred_element_type=jnp.float32) + b3
    out_ref[...] = jax.nn.sigmoid(o)


def decoder_forward(z, w1, b1, w2, b2, w3, b3, *, tm=256):
    """z: (B, latent_dim) -> x_hat: (B, 1, 28, 28)

    Weights are stored pre-transposed as (in_dim, out_dim) so the kernel does
    plain `z @ W`. The final NCHW reshape is glue done in plain JAX.
    """
    B, L = z.shape
    H = w1.shape[1]
    out_dim = w3.shape[1]
    assert out_dim == 28 * 28, "output_dim must be 784 for the 28x28 reshape"

    # Lane-dense output width: pad 784 -> 896 (= 7 * 128) so stores are
    # unmasked full-lane vst; padded columns are sliced off in the wrapper.
    out_pad = ((out_dim + 127) // 128) * 128
    if out_pad != out_dim:
        w3p = jnp.pad(w3, ((0, 0), (0, out_pad - out_dim)))
        b3p = jnp.pad(b3, ((0, 0), (0, out_pad - out_dim)))
    else:
        w3p, b3p = w3, b3

    # Batch tile: multiple of 8 sublanes, capped at `tm`. Pad B up so the
    # grid divides evenly (padded rows are sliced off afterwards).
    tm_eff = min(tm, ((B + 7) // 8) * 8)
    b_pad = pl.cdiv(B, tm_eff) * tm_eff
    z_in = jnp.pad(z, ((0, b_pad - B), (0, 0))) if b_pad != B else z

    grid = (b_pad // tm_eff,)

    x_flat = pl.pallas_call(
        decoder_kernel,
        out_shape=jax.ShapeDtypeStruct((b_pad, out_pad), jnp.float32),
        grid=grid,
        in_specs=[
            pl.BlockSpec((tm_eff, L), lambda i: (i, 0)),   # z tile
            pl.BlockSpec((L, H),       lambda i: (0, 0)),  # w1 (resident)
            pl.BlockSpec((1, H),       lambda i: (0, 0)),  # b1 (resident)
            pl.BlockSpec((H, H),       lambda i: (0, 0)),  # w2 (resident)
            pl.BlockSpec((1, H),       lambda i: (0, 0)),  # b2 (resident)
            pl.BlockSpec((H, out_pad), lambda i: (0, 0)),  # w3 (resident)
            pl.BlockSpec((1, out_pad), lambda i: (0, 0)),  # b3 (resident)
        ],
        out_specs=pl.BlockSpec((tm_eff, out_pad), lambda i: (i, 0)),
        compiler_params=pltpu.CompilerParams(
            dimension_semantics=("parallel",)),
    )(z_in, w1, b1, w2, b2, w3p, b3p)

    # Glue: drop batch/lane padding, NCHW reshape like torch .reshape(-1,1,28,28)
    return x_flat[:B, :out_dim].reshape(-1, 1, 28, 28)


def init_params(key, latent_dim, hidden_dim, output_dim):
    """Deterministic parameter init. Weights stored as (in_dim, out_dim)."""
    k1, k2, k3, k4, k5, k6 = jax.random.split(key, 6)
    scale = 0.05
    w1 = scale * jax.random.normal(k1, (latent_dim, hidden_dim), jnp.float32)
    b1 = scale * jax.random.normal(k2, (1, hidden_dim), jnp.float32)
    w2 = scale * jax.random.normal(k3, (hidden_dim, hidden_dim), jnp.float32)
    b2 = scale * jax.random.normal(k4, (1, hidden_dim), jnp.float32)
    w3 = scale * jax.random.normal(k5, (hidden_dim, output_dim), jnp.float32)
    b3 = scale * jax.random.normal(k6, (1, output_dim), jnp.float32)
    return w1, b1, w2, b2, w3, b3


def _reference(z, w1, b1, w2, b2, w3, b3):
    h = z @ w1 + b1
    h = jnp.where(h > 0, h, 0.2 * h)
    h = h @ w2 + b2
    h = jnp.where(h > 0, h, 0.2 * h)
    return jax.nn.sigmoid(h @ w3 + b3).reshape(-1, 1, 28, 28)


if __name__ == "__main__":
    latent_dim, hidden_dim, output_dim = 16, 32, 28 * 28

    key = jax.random.PRNGKey(0)
    kz, kz2, kp = jax.random.split(key, 3)
    params = init_params(kp, latent_dim, hidden_dim, output_dim)

    # Case 1: small batch (single grid step, tm_eff == 8).
    z_small = jax.random.normal(kz, (8, latent_dim), jnp.float32)
    x_small = jax.block_until_ready(decoder_forward(z_small, *params))
    ref_small = _reference(z_small, *params)
    assert x_small.shape == (8, 1, 28, 28), x_small.shape
    assert jnp.allclose(x_small, ref_small, atol=1e-5, rtol=1e-5)

    # Case 2: exercises multi-step grid + batch padding (B=20, TM=8 -> 3 tiles).
    z_multi = jax.random.normal(kz2, (20, latent_dim), jnp.float32)
    x_multi = jax.block_until_ready(decoder_forward(z_multi, *params, tm=8))
    ref_multi = _reference(z_multi, *params)
    assert x_multi.shape == (20, 1, 28, 28), x_multi.shape
    assert jnp.allclose(x_multi, ref_multi, atol=1e-5, rtol=1e-5)

    print("KERNEL_OK")
</pallas_src>

<mosaic_0001>
module attributes {stable_mosaic.version = 11 : i64} {
  func.func @decoder_kernel(%arg0: i32, %arg1: memref<8x16xf32, #tpu.memory_space<vmem>>, %arg2: memref<16x32xf32, #tpu.memory_space<vmem>>, %arg3: memref<1x32xf32, #tpu.memory_space<vmem>>, %arg4: memref<32x32xf32, #tpu.memory_space<vmem>>, %arg5: memref<1x32xf32, #tpu.memory_space<vmem>>, %arg6: memref<32x896xf32, #tpu.memory_space<vmem>>, %arg7: memref<1x896xf32, #tpu.memory_space<vmem>>, %arg8: memref<8x896xf32, #tpu.memory_space<vmem>>) attributes {dimension_semantics = [#tpu.dimension_semantics<parallel>], iteration_bounds = array<i64: 1>, scalar_prefetch = 0 : i64, scratch_operands = 0 : i64, tpu.core_type = #tpu.core_type<tc>, window_params = [{transform_indices = @transform_0, window_bounds = array<i64: 8, 16>}, {pipeline_mode = #tpu.pipeline_mode<synchronous>, transform_indices = @transform_1, window_bounds = array<i64: 16, 32>}, {pipeline_mode = #tpu.pipeline_mode<synchronous>, transform_indices = @transform_2, window_bounds = array<i64: 1, 32>}, {pipeline_mode = #tpu.pipeline_mode<synchronous>, transform_indices = @transform_3, window_bounds = array<i64: 32, 32>}, {pipeline_mode = #tpu.pipeline_mode<synchronous>, transform_indices = @transform_4, window_bounds = array<i64: 1, 32>}, {pipeline_mode = #tpu.pipeline_mode<synchronous>, transform_indices = @transform_5, window_bounds = array<i64: 32, 896>}, {pipeline_mode = #tpu.pipeline_mode<synchronous>, transform_indices = @transform_6, window_bounds = array<i64: 1, 896>}, {transform_indices = @transform_7, window_bounds = array<i64: 8, 896>}]} {
    %c0 = arith.constant 0 : index
    %c0_0 = arith.constant 0 : index
    %0 = vector.load %arg3[%c0, %c0_0] : memref<1x32xf32, #tpu.memory_space<vmem>>, vector<1x32xf32>
    %c0_1 = arith.constant 0 : index
    %c0_2 = arith.constant 0 : index
    %1 = vector.load %arg5[%c0_1, %c0_2] : memref<1x32xf32, #tpu.memory_space<vmem>>, vector<1x32xf32>
    %c0_3 = arith.constant 0 : index
    %c0_4 = arith.constant 0 : index
    %2 = vector.load %arg7[%c0_3, %c0_4] : memref<1x896xf32, #tpu.memory_space<vmem>>, vector<1x896xf32>
    %c0_5 = arith.constant 0 : index
    %c0_6 = arith.constant 0 : index
    %3 = vector.load %arg1[%c0_5, %c0_6] : memref<8x16xf32, #tpu.memory_space<vmem>>, vector<8x16xf32>
    %c0_7 = arith.constant 0 : index
    %c0_8 = arith.constant 0 : index
    %4 = vector.load %arg2[%c0_7, %c0_8] : memref<16x32xf32, #tpu.memory_space<vmem>>, vector<16x32xf32>
    %cst = arith.constant dense<0.000000e+00> : vector<8x32xf32>
    %5 = tpu.matmul %3, %4, %cst {dimension_numbers = #tpu.dot_dimension_numbers<[1], [0], [0], [1], [0, 0, 1, 1], [], []>} : vector<8x16xf32>, vector<16x32xf32>, vector<8x32xf32> -> vector<8x32xf32>
    %6 = vector.broadcast %0 : vector<1x32xf32> to vector<8x32xf32>
    %7 = arith.addf %5, %6 : vector<8x32xf32>
    %cst_9 = arith.constant 0.000000e+00 : f32
    %8 = vector.broadcast %cst_9 : f32 to vector<8x32xf32>
    %9 = arith.cmpf ogt, %7, %8 : vector<8x32xf32>
    %cst_10 = arith.constant 2.000000e-01 : f32
    %10 = vector.broadcast %cst_10 : f32 to vector<8x32xf32>
    %11 = arith.mulf %10, %7 : vector<8x32xf32>
    %12 = arith.select %9, %7, %11 : vector<8x32xi1>, vector<8x32xf32>
    %c0_11 = arith.constant 0 : index
    %c0_12 = arith.constant 0 : index
    %13 = vector.load %arg4[%c0_11, %c0_12] : memref<32x32xf32, #tpu.memory_space<vmem>>, vector<32x32xf32>
    %cst_13 = arith.constant dense<0.000000e+00> : vector<8x32xf32>
    %14 = tpu.matmul %12, %13, %cst_13 {dimension_numbers = #tpu.dot_dimension_numbers<[1], [0], [0], [1], [0, 0, 1, 1], [], []>} : vector<8x32xf32>, vector<32x32xf32>, vector<8x32xf32> -> vector<8x32xf32>
    %15 = vector.broadcast %1 : vector<1x32xf32> to vector<8x32xf32>
    %16 = arith.addf %14, %15 : vector<8x32xf32>
    %cst_14 = arith.constant 0.000000e+00 : f32
    %17 = vector.broadcast %cst_14 : f32 to vector<8x32xf32>
    %18 = arith.cmpf ogt, %16, %17 : vector<8x32xf32>
    %cst_15 = arith.constant 2.000000e-01 : f32
    %19 = vector.broadcast %cst_15 : f32 to vector<8x32xf32>
    %20 = arith.mulf %19, %16 : vector<8x32xf32>
    %21 = arith.select %18, %16, %20 : vector<8x32xi1>, vector<8x32xf32>
    %c0_16 = arith.constant 0 : index
    %c0_17 = arith.constant 0 : index
    %22 = vector.load %arg6[%c0_16, %c0_17] : memref<32x896xf32, #tpu.memory_space<vmem>>, vector<32x896xf32>
    %cst_18 = arith.constant dense<0.000000e+00> : vector<8x896xf32>
    %23 = tpu.matmul %21, %22, %cst_18 {dimension_numbers = #tpu.dot_dimension_numbers<[1], [0], [0], [1], [0, 0, 1, 1], [], []>} : vector<8x32xf32>, vector<32x896xf32>, vector<8x896xf32> -> vector<8x896xf32>
    %24 = vector.broadcast %2 : vector<1x896xf32> to vector<8x896xf32>
    %25 = arith.addf %23, %24 : vector<8x896xf32>
    %26 = arith.negf %25 : vector<8x896xf32>
    %27 = math.exp %26 : vector<8x896xf32>
    %cst_19 = arith.constant 1.000000e+00 : f32
    %28 = vector.broadcast %cst_19 : f32 to vector<8x896xf32>
    %29 = arith.addf %28, %27 : vector<8x896xf32>
    %30 = arith.divf %28, %29 : vector<8x896xf32>
    %c0_20 = arith.constant 0 : index
    %c0_21 = arith.constant 0 : index
    %31 = vector.load %arg8[%c0_20, %c0_21] : memref<8x896xf32, #tpu.memory_space<vmem>>, vector<8x896xf32>
    tpu.vector_store %arg8[%c0_20, %c0_21], %30 {strides = array<i32>} : memref<8x896xf32, #tpu.memory_space<vmem>>, vector<8x896xf32>,
    return
  }
  func.func @transform_0(%arg0: i32) -> (i32, i32) {
    %c0_i32 = arith.constant 0 : i32
    %c0_i32_0 = arith.constant 0 : i32
    return %arg0, %c0_i32 : i32, i32
  }
  func.func @transform_1(%arg0: i32) -> (i32, i32) {
    %c0_i32 = arith.constant 0 : i32
    %c0_i32_0 = arith.constant 0 : i32
    %c0_i32_1 = arith.constant 0 : i32
    return %c0_i32, %c0_i32_0 : i32, i32
  }
  func.func @transform_2(%arg0: i32) -> (i32, i32) {
    %c0_i32 = arith.constant 0 : i32
    %c0_i32_0 = arith.constant 0 : i32
    %c0_i32_1 = arith.constant 0 : i32
    return %c0_i32, %c0_i32_0 : i32, i32
  }
  func.func @transform_3(%arg0: i32) -> (i32, i32) {
    %c0_i32 = arith.constant 0 : i32
    %c0_i32_0 = arith.constant 0 : i32
    %c0_i32_1 = arith.constant 0 : i32
    return %c0_i32, %c0_i32_0 : i32, i32
  }
  func.func @transform_4(%arg0: i32) -> (i32, i32) {
    %c0_i32 = arith.constant 0 : i32
    %c0_i32_0 = arith.constant 0 : i32
    %c0_i32_1 = arith.constant 0 : i32
    return %c0_i32, %c0_i32_0 : i32, i32
  }
  func.func @transform_5(%arg0: i32) -> (i32, i32) {
    %c0_i32 = arith.constant 0 : i32
    %c0_i32_0 = arith.constant 0 : i32
    %c0_i32_1 = arith.constant 0 : i32
    return %c0_i32, %c0_i32_0 : i32, i32
  }
  func.func @transform_6(%arg0: i32) -> (i32, i32) {
    %c0_i32 = arith.constant 0 : i32
    %c0_i32_0 = arith.constant 0 : i32
    %c0_i32_1 = arith.constant 0 : i32
    return %c0_i32, %c0_i32_0 : i32, i32
  }
  func.func @transform_7(%arg0: i32) -> (i32, i32) {
    %c0_i32 = arith.constant 0 : i32
    %c0_i32_0 = arith.constant 0 : i32
    return %arg0, %c0_i32 : i32, i32
  }
}

</mosaic_0001>

<llo_original>
// kernel: tpu_custom_call.1
$region0: #{tpu_custom_call.1}
  #allocation0 [shape = 'u32[]', space=smem, size = 0x4, offset = 0x4, fixed_abs, tag = 'smem constant byte address 0x4 - core index']
  #allocation1 [shape = 'u32[72,128]{1,0:T(1,128)}', space=vmem, size = 0x9000, scoped, tag = 'internal scratch']
  %s0 = inlined_call_operand.hbm [shape: f32[8,16], index: 0, kind: input, shape index: {}]
  %s1 = inlined_call_operand.hbm [shape: f32[16,32], index: 1, kind: input, shape index: {}]
  %s2 = inlined_call_operand.vmem [shape: f32[1,32], index: 2, kind: input, shape index: {}]
  %s3 = inlined_call_operand.hbm [shape: f32[32,32], index: 3, kind: input, shape index: {}]
  %s4 = inlined_call_operand.vmem [shape: f32[1,32], index: 4, kind: input, shape index: {}]
  %s5 = inlined_call_operand.hbm [shape: f32[32,896], index: 5, kind: input, shape index: {}]
  %s6 = inlined_call_operand.hbm [shape: f32[1,896], index: 6, kind: input, shape index: {}]
  %s7 = inlined_call_operand.hbm [shape: f32[8,896], index: 7, kind: output, shape index: {}]
  %s8 = sld [smem:[#allocation0]]
  $region58: #{tpu_custom_call.1} parent=0
    _
  %s10 = ssub.s32 1, %s8
  %s11 = scalar_select 0, %s10, %s8
  $region1: #{tpu_custom_call.1} parent=0
    #allocation2 [shape = 'u8[4096]{0}', space=vmem, size = 0x1000, scoped, tag = 'input window, operand 0, single buffered']
    #allocation3 [shape = 's32[1]{0}', space=sflag, size = 0x4, scoped, tag = 'scoped memory for tpu_custom_call.1']
    #allocation4 [shape = 's32[1]{0}', space=sflag, size = 0x4, scoped, tag = 'scoped memory for tpu_custom_call.1']
    #allocation5 [shape = 'u8[8192]{0}', space=vmem, size = 0x2000, scoped, tag = 'input window, operand 1, single buffered']
    #allocation6 [shape = 's32[1]{0}', space=sflag, size = 0x4, scoped, tag = 'scoped memory for tpu_custom_call.1']
    #allocation7 [shape = 'u8[16384]{0}', space=vmem, size = 0x4000, scoped, tag = 'input window, operand 3, single buffered']
    #allocation8 [shape = 'u8[114688]{0}', space=vmem, size = 0x1c000, scoped, tag = 'input window, operand 5, single buffered']
    #allocation9 [shape = 's32[1]{0}', space=sflag, size = 0x4, scoped, tag = 'scoped memory for tpu_custom_call.1']
    #allocation10 [shape = 'u8[3584]{0}', space=vmem, size = 0x1000, scoped, tag = 'input window, operand 6, single buffered']
    #allocation11 [shape = 'u8[28672]{0}', space=vmem, size = 0x7000, scoped, tag = 'output window, operand 0, single buffered']
    %12 = vsyncpa [#allocation3], 0
    %13 = vsyncpa [#allocation6], 0
    %14 = vsyncpa [#allocation9], 0
    %15 = vsyncpa [#allocation4], 0
    // Predicated region
    $region2: #{tpu_custom_call.1} parent=1 // pred_check
      _
    $region3: #{tpu_custom_call.1} parent=1 // pred_check_branch
      %17 = sbr.rel (0) target = $region5
    $region4: #{tpu_custom_call.1} parent=1 // pred_region
      %19 = vsyncadd [#allocation3], 0
      %s21 = sshll.u32 %s0, 4
      %s22 = int_to_ptr.hbm [resolvable:$true] %s21
      %s23 = sshll.u32 [#allocation2], 4
      %s24 = int_to_ptr.vmem [resolvable:$true] %s23
      %26 = dma.hbm_to_vmem [thread:$0]  %s22, 128, %s24, [#allocation3]
    $region5: #{tpu_custom_call.1} parent=1 // pred_fallthru
      _
    // Predicated region
    $region6: #{tpu_custom_call.1} parent=1 // pred_check
      _
    $region7: #{tpu_custom_call.1} parent=1 // pred_check_branch
      %28 = sbr.rel (0) target = $region9
    $region8: #{tpu_custom_call.1} parent=1 // pred_region
      %30 = vsyncadd [#allocation6], 0
      %s31 = sshll.u32 %s1, 4
      %s32 = int_to_ptr.hbm [resolvable:$true] %s31
      %s33 = sshll.u32 [#allocation5], 4
      %s34 = int_to_ptr.vmem [resolvable:$true] %s33
      %39 = dma.hbm_to_vmem [thread:$0]  %s32, 256, %s34, [#allocation6], 128, 128, 8
    $region9: #{tpu_custom_call.1} parent=1 // pred_fallthru
      _
    // Predicated region
    $region10: #{tpu_custom_call.1} parent=1 // pred_check
      _
    $region11: #{tpu_custom_call.1} parent=1 // pred_check_branch
      %41 = sbr.rel (0) target = $region13
    $region12: #{tpu_custom_call.1} parent=1 // pred_region
      _
    $region13: #{tpu_custom_call.1} parent=1 // pred_fallthru
      _
    // Predicated region
    $region14: #{tpu_custom_call.1} parent=1 // pred_check
      _
    $region15: #{tpu_custom_call.1} parent=1 // pred_check_branch
      %43 = sbr.rel (0) target = $region17
    $region16: #{tpu_custom_call.1} parent=1 // pred_region
      %45 = vsyncadd [#allocation6], 0
      %s46 = sshll.u32 %s3, 4
      %s47 = int_to_ptr.hbm [resolvable:$true] %s46
      %s48 = sshll.u32 [#allocation7], 4
      %s49 = int_to_ptr.vmem [resolvable:$true] %s48
      %54 = dma.hbm_to_vmem [thread:$0]  %s47, 512, %s49, [#allocation6], 128, 128, 8
    $region17: #{tpu_custom_call.1} parent=1 // pred_fallthru
      _
    // Predicated region
    $region18: #{tpu_custom_call.1} parent=1 // pred_check
      _
    $region19: #{tpu_custom_call.1} parent=1 // pred_check_branch
      %56 = sbr.rel (0) target = $region21
    $region20: #{tpu_custom_call.1} parent=1 // pred_region
      _
    $region21: #{tpu_custom_call.1} parent=1 // pred_fallthru
      _
    // Predicated region
    $region22: #{tpu_custom_call.1} parent=1 // pred_check
      _
    $region23: #{tpu_custom_call.1} parent=1 // pred_check_branch
      %58 = sbr.rel (0) target = $region25
    $region24: #{tpu_custom_call.1} parent=1 // pred_region
      %60 = vsyncadd [#allocation9], 0
      %s61 = sshll.u32 %s5, 4
      %s62 = int_to_ptr.hbm [resolvable:$true] %s61
      %s63 = sshll.u32 [#allocation8], 4
      %s64 = int_to_ptr.vmem [resolvable:$true] %s63
      %69 = dma.hbm_to_vmem [thread:$0]  %s62, 3584, %s64, [#allocation9], 896, 896, 56
    $region25: #{tpu_custom_call.1} parent=1 // pred_fallthru
      _
    // Predicated region
    $region26: #{tpu_custom_call.1} parent=1 // pred_check
      _
    $region27: #{tpu_custom_call.1} parent=1 // pred_check_branch
      %71 = sbr.rel (0) target = $region29
    $region28: #{tpu_custom_call.1} parent=1 // pred_region
      %73 = vsyncadd [#allocation9], 0
      %s75 = sshll.u32 %s6, 4
      %s76 = int_to_ptr.hbm [resolvable:$true] %s75
      %s77 = sshll.u32 [#allocation10], 4
      %s78 = int_to_ptr.vmem [resolvable:$true] %s77
      %80 = dma.hbm_to_vmem [thread:$0]  %s76, 112, %s78, [#allocation9]
    $region29: #{tpu_custom_call.1} parent=1 // pred_fallthru
      _
    // Predicated region
    $region30: #{tpu_custom_call.1} parent=1 // pred_check
      _
    $region31: #{tpu_custom_call.1} parent=1 // pred_check_branch
      %82 = sbr.rel (0) target = $region33
    $region32: #{tpu_custom_call.1} parent=1 // pred_region
      %84 = dma.done [#allocation3], 128
    $region33: #{tpu_custom_call.1} parent=1 // pred_fallthru
      _
    // Predicated region
    $region34: #{tpu_custom_call.1} parent=1 // pred_check
      _
    $region35: #{tpu_custom_call.1} parent=1 // pred_check_branch
      %86 = sbr.rel (0) target = $region37
    $region36: #{tpu_custom_call.1} parent=1 // pred_region
      %88 = dma.done [#allocation6], 256
    $region37: #{tpu_custom_call.1} parent=1 // pred_fallthru
      _
    // Predicated region
    $region38: #{tpu_custom_call.1} parent=1 // pred_check
      _
    $region39: #{tpu_custom_call.1} parent=1 // pred_check_branch
      %90 = sbr.rel (0) target = $region41
    $region40: #{tpu_custom_call.1} parent=1 // pred_region
      %92 = dma.done [#allocation6], 512
    $region41: #{tpu_custom_call.1} parent=1 // pred_fallthru
      _
    // Predicated region
    $region42: #{tpu_custom_call.1} parent=1 // pred_check
      _
    $region43: #{tpu_custom_call.1} parent=1 // pred_check_branch
      %94 = sbr.rel (0) target = $region45
    $region44: #{tpu_custom_call.1} parent=1 // pred_region
      %96 = dma.done [#allocation9], 3584
    $region45: #{tpu_custom_call.1} parent=1 // pred_fallthru
      _
    // Predicated region
    $region46: #{tpu_custom_call.1} parent=1 // pred_check
      _
    $region47: #{tpu_custom_call.1} parent=1 // pred_check_branch
      %98 = sbr.rel (0) target = $region49
    $region48: #{tpu_custom_call.1} parent=1 // pred_region
      %100 = dma.done [#allocation9], 112
    $region49: #{tpu_custom_call.1} parent=1 // pred_fallthru
      _
    %v101 = vld [vmem:[%s2] sm:$0x1]
    %v102 = vld [vmem:[%s4] sm:$0x1]
    %v103 = vld [vmem:[#allocation10] sm:$0xff]
    %v104 = vld [vmem:[#allocation2] sm:$0xff]
    %v105 = vld [vmem:[#allocation5] sm:$0xff]
    %v106 = vld [vmem:[#allocation5 + $0x8] sm:$0xff]
    %v108 = vperm.slane %v101, 0
    %vm110 = vcmask 130048
    %v112 = vsel %vm110, %v104, 0
    %114 = vmatpush.msra.mxu0 0.0
    %115 = vmatpush.msra.mxu0 0.0
    %116 = vmatpush.msra.mxu0 0.0
    %117 = vmatpush.msra.mxu0 0.0
    %118 = vmatpush.msra.mxu0 0.0
    %119 = vmatpush.msra.mxu0 0.0
    %120 = vmatpush.msra.mxu0 0.0
    %121 = vmatpush.msra.mxu0 0.0
    %122 = vmatpush.msra.mxu0 0.0
    %123 = vmatpush.msra.mxu0 0.0
    %124 = vmatpush.msra.mxu0 0.0
    %125 = vmatpush.msra.mxu0 0.0
    %126 = vmatpush.msra.mxu0 0.0
    %127 = vmatpush.msra.mxu0 0.0
    %128 = vmatpush.msra.mxu0 %v106
    %129 = vmatpush.msra.mxu0 %v105
    %130 = vmatmul.f32.gmra.mxu0 %v112
    %v131 = vpop.f32.mrf.mxu0
    %v132 = vadd.f32 %v108, %v131
    %133 = vdwg.mxu0
    %vm134 = vcmp.gt.f32.partialorder %v132, 0.0
    %v135 = vmul.f32 %v132, 0.2
    %v136 = vsel %vm134, %v132, %v135
    %v137 = vld [vmem:[#allocation7] sm:$0xff]
    %v138 = vld [vmem:[#allocation7 + $0x8] sm:$0xff]
    %v139 = vld [vmem:[#allocation7 + $0x10] sm:$0xff]
    %v140 = vld [vmem:[#allocation7 + $0x18] sm:$0xff]
    %v142 = vperm.slane %v102, 0
    %vm144 = vcmask 261120
    %v146 = vsel %vm144, %v136, 0
    %148 = vmatpush.msra.mxu0 0.0
    %149 = vmatpush.msra.mxu0 0.0
    %150 = vmatpush.msra.mxu0 0.0
    %151 = vmatpush.msra.mxu0 0.0
    %152 = vmatpush.msra.mxu0 0.0
    %153 = vmatpush.msra.mxu0 0.0
    %154 = vmatpush.msra.mxu0 0.0
    %155 = vmatpush.msra.mxu0 0.0
    %156 = vmatpush.msra.mxu0 0.0
    %157 = vmatpush.msra.mxu0 0.0
    %158 = vmatpush.msra.mxu0 0.0
    %159 = vmatpush.msra.mxu0 0.0
    %160 = vmatpush.msra.mxu0 %v140
    %161 = vmatpush.msra.mxu0 %v139
    %162 = vmatpush.msra.mxu0 %v138
    %163 = vmatpush.msra.mxu0 %v137
    %164 = vmatmul.f32.gmra.mxu0 %v146
    %v165 = vpop.f32.mrf.mxu0
    %v166 = vadd.f32 %v142, %v165
    %167 = vdwg.mxu0
    %vm168 = vcmp.gt.f32.partialorder %v166, 0.0
    %v169 = vmul.f32 %v166, 0.2
    %v170 = vsel %vm168, %v166, %v169
    %v171 = vld [vmem:[#allocation8] sm:$0xff]
    %v172 = vld [vmem:[#allocation8 + $0x8] sm:$0xff]
    %v173 = vld [vmem:[#allocation8 + $0x10] sm:$0xff]
    %v174 = vld [vmem:[#allocation8 + $0x18] sm:$0xff]
    %v175 = vld [vmem:[#allocation8 + $0x20] sm:$0xff]
    %v176 = vld [vmem:[#allocation8 + $0x28] sm:$0xff]
    %v177 = vld [vmem:[#allocation8 + $0x30] sm:$0xff]
    %v178 = vld [vmem:[#allocation8 + $0x38] sm:$0xff]
    %v179 = vld [vmem:[#allocation8 + $0x40] sm:$0xff]
    %v180 = vld [vmem:[#allocation8 + $0x48] sm:$0xff]
    %v181 = vld [vmem:[#allocation8 + $0x50] sm:$0xff]
    %v182 = vld [vmem:[#allocation8 + $0x58] sm:$0xff]
    %v183 = vld [vmem:[#allocation8 + $0x60] sm:$0xff]
    %v184 = vld [vmem:[#allocation8 + $0x68] sm:$0xff]
    %v185 = vld [vmem:[#allocation8 + $0x70] sm:$0xff]
    %v186 = vld [vmem:[#allocation8 + $0x78] sm:$0xff]
    %v187 = vld [vmem:[#allocation8 + $0x80] sm:$0xff]
    %v188 = vld [vmem:[#allocation8 + $0x88] sm:$0xff]
    %v189 = vld [vmem:[#allocation8 + $0x90] sm:$0xff]
    %v190 = vld [vmem:[#allocation8 + $0x98] sm:$0xff]
    %v191 = vld [vmem:[#allocation8 + $0xa0] sm:$0xff]
    %v192 = vld [vmem:[#allocation8 + $0xa8] sm:$0xff]
    %v193 = vld [vmem:[#allocation8 + $0xb0] sm:$0xff]
    %v194 = vld [vmem:[#allocation8 + $0xb8] sm:$0xff]
    %v195 = vld [vmem:[#allocation8 + $0xc0] sm:$0xff]
    %v196 = vld [vmem:[#allocation8 + $0xc8] sm:$0xff]
    %v197 = vld [vmem:[#allocation8 + $0xd0] sm:$0xff]
    %v198 = vld [vmem:[#allocation8 + $0xd8] sm:$0xff]
    %v200 = vperm.slane %v103, 0
    %v201 = vperm.slane %v103, 1
    %v202 = vperm.slane %v103, 2
    %v203 = vperm.slane %v103, 3
    %v204 = vperm.slane %v103, 4
    %v205 = vperm.slane %v103, 5
    %v206 = vperm.slane %v103, 6
    %v215 = vsel %vm144, %v170, 0
    %217 = vmatpush.msra.mxu0 0.0
    %218 = vmatpush.msra.mxu0 0.0
    %219 = vmatpush.msra.mxu0 0.0
    %220 = vmatpush.msra.mxu0 0.0
    %221 = vmatpush.msra.mxu0 0.0
    %222 = vmatpush.msra.mxu0 0.0
    %223 = vmatpush.msra.mxu0 0.0
    %224 = vmatpush.msra.mxu0 0.0
    %225 = vmatpush.msra.mxu0 0.0
    %226 = vmatpush.msra.mxu0 0.0
    %227 = vmatpush.msra.mxu0 0.0
    %228 = vmatpush.msra.mxu0 0.0
    %229 = vmatpush.msra.mxu0 %v192
    %230 = vmatpush.msra.mxu0 %v185
    %231 = vmatpush.msra.mxu0 %v178
    %232 = vmatpush.msra.mxu0 %v171
    %233 = vmatmul.f32.gmra.mxu0 %v215
    %v234 = vpop.f32.mrf.mxu0
    %v235 = vadd.f32 %v200, %v234
    %236 = vdwg.mxu0
    %237 = vmatpush.msra.mxu0 0.0
    %238 = vmatpush.msra.mxu0 0.0
    %239 = vmatpush.msra.mxu0 0.0
    %240 = vmatpush.msra.mxu0 0.0
    %241 = vmatpush.msra.mxu0 0.0
    %242 = vmatpush.msra.mxu0 0.0
    %243 = vmatpush.msra.mxu0 0.0
    %244 = vmatpush.msra.mxu0 0.0
    %245 = vmatpush.msra.mxu0 0.0
    %246 = vmatpush.msra.mxu0 0.0
    %247 = vmatpush.msra.mxu0 0.0
    %248 = vmatpush.msra.mxu0 0.0
    %249 = vmatpush.msra.mxu0 %v193
    %250 = vmatpush.msra.mxu0 %v186
    %251 = vmatpush.msra.mxu0 %v179
    %252 = vmatpush.msra.mxu0 %v172
    %253 = vmatmul.f32.gmra.mxu0 %v215
    %v254 = vpop.f32.mrf.mxu0
    %v255 = vadd.f32 %v201, %v254
    %256 = vdwg.mxu0
    %257 = vmatpush.msra.mxu0 0.0
    %258 = vmatpush.msra.mxu0 0.0
    %259 = vmatpush.msra.mxu0 0.0
    %260 = vmatpush.msra.mxu0 0.0
    %261 = vmatpush.msra.mxu0 0.0
    %262 = vmatpush.msra.mxu0 0.0
    %263 = vmatpush.msra.mxu0 0.0
    %264 = vmatpush.msra.mxu0 0.0
    %265 = vmatpush.msra.mxu0 0.0
    %266 = vmatpush.msra.mxu0 0.0
    %267 = vmatpush.msra.mxu0 0.0
    %268 = vmatpush.msra.mxu0 0.0
    %269 = vmatpush.msra.mxu0 %v194
    %270 = vmatpush.msra.mxu0 %v187
    %271 = vmatpush.msra.mxu0 %v180
    %272 = vmatpush.msra.mxu0 %v173
    %273 = vmatmul.f32.gmra.mxu0 %v215
    %v274 = vpop.f32.mrf.mxu0
    %v275 = vadd.f32 %v202, %v274
    %276 = vdwg.mxu0
    %277 = vmatpush.msra.mxu0 0.0
    %278 = vmatpush.msra.mxu0 0.0
    %279 = vmatpush.msra.mxu0 0.0
    %280 = vmatpush.msra.mxu0 0.0
    %281 = vmatpush.msra.mxu0 0.0
    %282 = vmatpush.msra.mxu0 0.0
    %283 = vmatpush.msra.mxu0 0.0
    %284 = vmatpush.msra.mxu0 0.0
    %285 = vmatpush.msra.mxu0 0.0
    %286 = vmatpush.msra.mxu0 0.0
    %287 = vmatpush.msra.mxu0 0.0
    %288 = vmatpush.msra.mxu0 0.0
    %289 = vmatpush.msra.mxu0 %v195
    %290 = vmatpush.msra.mxu0 %v188
    %291 = vmatpush.msra.mxu0 %v181
    %292 = vmatpush.msra.mxu0 %v174
    %293 = vmatmul.f32.gmra.mxu0 %v215
    %v294 = vpop.f32.mrf.mxu0
    %v295 = vadd.f32 %v203, %v294
    %296 = vdwg.mxu0
    %297 = vmatpush.msra.mxu0 0.0
    %298 = vmatpush.msra.mxu0 0.0
    %299 = vmatpush.msra.mxu0 0.0
    %300 = vmatpush.msra.mxu0 0.0
    %301 = vmatpush.msra.mxu0 0.0
    %302 = vmatpush.msra.mxu0 0.0
    %303 = vmatpush.msra.mxu0 0.0
    %304 = vmatpush.msra.mxu0 0.0
    %305 = vmatpush.msra.mxu0 0.0
    %306 = vmatpush.msra.mxu0 0.0
    %307 = vmatpush.msra.mxu0 0.0
    %308 = vmatpush.msra.mxu0 0.0
    %309 = vmatpush.msra.mxu0 %v196
    %310 = vmatpush.msra.mxu0 %v189
    %311 = vmatpush.msra.mxu0 %v182
    %312 = vmatpush.msra.mxu0 %v175
    %313 = vmatmul.f32.gmra.mxu0 %v215
    %v314 = vpop.f32.mrf.mxu0
    %v315 = vadd.f32 %v204, %v314
    %316 = vdwg.mxu0
    %317 = vmatpush.msra.mxu0 0.0
    %318 = vmatpush.msra.mxu0 0.0
    %319 = vmatpush.msra.mxu0 0.0
    %320 = vmatpush.msra.mxu0 0.0
    %321 = vmatpush.msra.mxu0 0.0
    %322 = vmatpush.msra.mxu0 0.0
    %323 = vmatpush.msra.mxu0 0.0
    %324 = vmatpush.msra.mxu0 0.0
    %325 = vmatpush.msra.mxu0 0.0
    %326 = vmatpush.msra.mxu0 0.0
    %327 = vmatpush.msra.mxu0 0.0
    %328 = vmatpush.msra.mxu0 0.0
    %329 = vmatpush.msra.mxu0 %v197
    %330 = vmatpush.msra.mxu0 %v190
    %331 = vmatpush.msra.mxu0 %v183
    %332 = vmatpush.msra.mxu0 %v176
    %333 = vmatmul.f32.gmra.mxu0 %v215
    %v334 = vpop.f32.mrf.mxu0
    %v335 = vadd.f32 %v205, %v334
    %336 = vdwg.mxu0
    %337 = vmatpush.msra.mxu0 0.0
    %338 = vmatpush.msra.mxu0 0.0
    %339 = vmatpush.msra.mxu0 0.0
    %340 = vmatpush.msra.mxu0 0.0
    %341 = vmatpush.msra.mxu0 0.0
    %342 = vmatpush.msra.mxu0 0.0
    %343 = vmatpush.msra.mxu0 0.0
    %344 = vmatpush.msra.mxu0 0.0
    %345 = vmatpush.msra.mxu0 0.0
    %346 = vmatpush.msra.mxu0 0.0
    %347 = vmatpush.msra.mxu0 0.0
    %348 = vmatpush.msra.mxu0 0.0
    %349 = vmatpush.msra.mxu0 %v198
    %350 = vmatpush.msra.mxu0 %v191
    %351 = vmatpush.msra.mxu0 %v184
    %352 = vmatpush.msra.mxu0 %v177
    %353 = vmatmul.f32.gmra.mxu0 %v215
    %v354 = vpop.f32.mrf.mxu0
    %v355 = vadd.f32 %v206, %v354
    %356 = vdwg.mxu0
    %v357 = vxor.u32 %v235, 2147483648
    %v358 = vxor.u32 %v255, 2147483648
    %v359 = vxor.u32 %v275, 2147483648
    %v360 = vxor.u32 %v295, 2147483648
    %v361 = vxor.u32 %v315, 2147483648
    %v362 = vxor.u32 %v335, 2147483648
    %v363 = vxor.u32 %v355, 2147483648
    %v364 = vmul.f32 %v357, 1.442695
    %v365 = vpow.pop %v364
    %v366 = vmul.f32 %v358, 1.442695
    %v367 = vpow.pop %v366
    %v368 = vmul.f32 %v359, 1.442695
    %v369 = vpow.pop %v368
    %v370 = vmul.f32 %v360, 1.442695
    %v371 = vpow.pop %v370
    %v372 = vmul.f32 %v361, 1.442695
    %v373 = vpow.pop %v372
    %v374 = vmul.f32 %v362, 1.442695
    %v375 = vpow.pop %v374
    %v376 = vmul.f32 %v363, 1.442695
    %v377 = vpow.pop %v376
    %v378 = vadd.f32 %v365, 1.0
    %v379 = vadd.f32 %v367, 1.0
    %v380 = vadd.f32 %v369, 1.0
    %v381 = vadd.f32 %v371, 1.0
    %v382 = vadd.f32 %v373, 1.0
    %v383 = vadd.f32 %v375, 1.0
    %v384 = vadd.f32 %v377, 1.0
    %v385 = vrcp.pop %v378
    %v386 = vmul.f32 %v378, %v385
    %v387 = vsub.f32 1.0, %v386
    %v388 = vmul.f32 %v385, %v387
    %v389 = vadd.f32 %v385, %v388
    %vm390 = vweird.f32 %v378
    %vm391 = vweird.f32 %v385
    %vm392 = vmor %vm390, %vm391
    %v393 = vsel %vm392, %v385, %v389
    %v394 = vand.u32 2147483647, %v378
    %vm395 = vcmp.eq.f32.partialorder %v394, 8.507059e+37
    %v396 = vand.u32 %v378, 2147483648
    %v397 = vor.u32 1.1754944e-38, %v396
    %v398 = vsel %vm395, %v397, %v393
    %v399 = vmul.f32 1.0, %v398
    %v400 = vrcp.pop %v379
    %v401 = vmul.f32 %v379, %v400
    %v402 = vsub.f32 1.0, %v401
    %v403 = vmul.f32 %v400, %v402
    %v404 = vadd.f32 %v400, %v403
    %vm405 = vweird.f32 %v379
    %vm406 = vweird.f32 %v400
    %vm407 = vmor %vm405, %vm406
    %v408 = vsel %vm407, %v400, %v404
    %v409 = vand.u32 2147483647, %v379
    %vm410 = vcmp.eq.f32.partialorder %v409, 8.507059e+37
    %v411 = vand.u32 %v379, 2147483648
    %v412 = vor.u32 1.1754944e-38, %v411
    %v413 = vsel %vm410, %v412, %v408
    %v414 = vmul.f32 1.0, %v413
    %v415 = vrcp.pop %v380
    %v416 = vmul.f32 %v380, %v415
    %v417 = vsub.f32 1.0, %v416
    %v418 = vmul.f32 %v415, %v417
    %v419 = vadd.f32 %v415, %v418
    %vm420 = vweird.f32 %v380
    %vm421 = vweird.f32 %v415
    %vm422 = vmor %vm420, %vm421
    %v423 = vsel %vm422, %v415, %v419
    %v424 = vand.u32 2147483647, %v380
    %vm425 = vcmp.eq.f32.partialorder %v424, 8.507059e+37
    %v426 = vand.u32 %v380, 2147483648
    %v427 = vor.u32 1.1754944e-38, %v426
    %v428 = vsel %vm425, %v427, %v423
    %v429 = vmul.f32 1.0, %v428
    %v430 = vrcp.pop %v381
    %v431 = vmul.f32 %v381, %v430
    %v432 = vsub.f32 1.0, %v431
    %v433 = vmul.f32 %v430, %v432
    %v434 = vadd.f32 %v430, %v433
    %vm435 = vweird.f32 %v381
    %vm436 = vweird.f32 %v430
    %vm437 = vmor %vm435, %vm436
    %v438 = vsel %vm437, %v430, %v434
    %v439 = vand.u32 2147483647, %v381
    %vm440 = vcmp.eq.f32.partialorder %v439, 8.507059e+37
    %v441 = vand.u32 %v381, 2147483648
    %v442 = vor.u32 1.1754944e-38, %v441
    %v443 = vsel %vm440, %v442, %v438
    %v444 = vmul.f32 1.0, %v443
    %v445 = vrcp.pop %v382
    %v446 = vmul.f32 %v382, %v445
    %v447 = vsub.f32 1.0, %v446
    %v448 = vmul.f32 %v445, %v447
    %v449 = vadd.f32 %v445, %v448
    %vm450 = vweird.f32 %v382
    %vm451 = vweird.f32 %v445
    %vm452 = vmor %vm450, %vm451
    %v453 = vsel %vm452, %v445, %v449
    %v454 = vand.u32 2147483647, %v382
    %vm455 = vcmp.eq.f32.partialorder %v454, 8.507059e+37
    %v456 = vand.u32 %v382, 2147483648
    %v457 = vor.u32 1.1754944e-38, %v456
    %v458 = vsel %vm455, %v457, %v453
    %v459 = vmul.f32 1.0, %v458
    %v460 = vrcp.pop %v383
    %v461 = vmul.f32 %v383, %v460
    %v462 = vsub.f32 1.0, %v461
    %v463 = vmul.f32 %v460, %v462
    %v464 = vadd.f32 %v460, %v463
    %vm465 = vweird.f32 %v383
    %vm466 = vweird.f32 %v460
    %vm467 = vmor %vm465, %vm466
    %v468 = vsel %vm467, %v460, %v464
    %v469 = vand.u32 2147483647, %v383
    %vm470 = vcmp.eq.f32.partialorder %v469, 8.507059e+37
    %v471 = vand.u32 %v383, 2147483648
    %v472 = vor.u32 1.1754944e-38, %v471
    %v473 = vsel %vm470, %v472, %v468
    %v474 = vmul.f32 1.0, %v473
    %v475 = vrcp.pop %v384
    %v476 = vmul.f32 %v384, %v475
    %v477 = vsub.f32 1.0, %v476
    %v478 = vmul.f32 %v475, %v477
    %v479 = vadd.f32 %v475, %v478
    %vm480 = vweird.f32 %v384
    %vm481 = vweird.f32 %v475
    %vm482 = vmor %vm480, %vm481
    %v483 = vsel %vm482, %v475, %v479
    %v484 = vand.u32 2147483647, %v384
    %vm485 = vcmp.eq.f32.partialorder %v484, 8.507059e+37
    %v486 = vand.u32 %v384, 2147483648
    %v487 = vor.u32 1.1754944e-38, %v486
    %v488 = vsel %vm485, %v487, %v483
    %v489 = vmul.f32 1.0, %v488
    %490 = vst [vmem:[#allocation11] sm:$0xff] %v399
    %491 = vst [vmem:[#allocation11 + $0x8] sm:$0xff] %v414
    %492 = vst [vmem:[#allocation11 + $0x10] sm:$0xff] %v429
    %493 = vst [vmem:[#allocation11 + $0x18] sm:$0xff] %v444
    %494 = vst [vmem:[#allocation11 + $0x20] sm:$0xff] %v459
    %495 = vst [vmem:[#allocation11 + $0x28] sm:$0xff] %v474
    %496 = vst [vmem:[#allocation11 + $0x30] sm:$0xff] %v489
    // Predicated region
    $region50: #{tpu_custom_call.1} parent=1 // pred_check
      _
    $region51: #{tpu_custom_call.1} parent=1 // pred_check_branch
      %498 = sbr.rel (0) target = $region53
    $region52: #{tpu_custom_call.1} parent=1 // pred_region
      %500 = vsyncadd [#allocation4], 0
      %s502 = sshll.u32 [#allocation11], 4
      %s503 = int_to_ptr.vmem [resolvable:$true] %s502
      %s504 = sshll.u32 %s7, 4
      %s505 = int_to_ptr.hbm [resolvable:$true] %s504
      %507 = dma.vmem_to_hbm [thread:$0]  %s503, 896, %s505, [#allocation4]
    $region53: #{tpu_custom_call.1} parent=1 // pred_fallthru
      _
    // Predicated region
    $region54: #{tpu_custom_call.1} parent=1 // pred_check
      _
    $region55: #{tpu_custom_call.1} parent=1 // pred_check_branch
      %509 = sbr.rel (0) target = $region57
    $region56: #{tpu_custom_call.1} parent=1 // pred_region
      %511 = dma.done [#allocation4], 896
    $region57: #{tpu_custom_call.1} parent=1 // pred_fallthru
      _
    %512 = vsyncpa [#allocation3], 1
    %513 = vsyncpa [#allocation6], 1
    %514 = vsyncpa [#allocation9], 1
    %515 = vsyncpa [#allocation4], 1

</llo_original>
